<compile_context>
chip_gen: v5e
topology: v5e:2x2
jax: 0.10.0
libtpu: 0.0.40
codegen_flags: <defaults>
</compile_context>

<pallas_src>
import math

import jax
import jax.numpy as jnp
from jax.experimental import pallas as pl
from jax.experimental.pallas import tpu as pltpu

MAX_POS = 500        # matches torch.FloatTensor(500, d_pos)
MAX_TILE_ROWS = 512  # output rows (original d_pos-wide rows) gathered per grid step


def build_pe_table(d_pos: int) -> jnp.ndarray:
    """Deterministic sinusoidal table, identical to the PyTorch __init__."""
    assert d_pos % 2 == 0, "d_pos must be even (same assumption as the PyTorch module)"
    position = jnp.arange(0, MAX_POS, dtype=jnp.float32)[:, None]            # (500, 1)
    weight = jnp.exp(
        jnp.arange(0, d_pos, 2, dtype=jnp.float32) * -(math.log(10000.0) / d_pos)
    )                                                                         # (d_pos//2,)
    angles = position * weight                                                # (500, d_pos//2)
    pe = jnp.zeros((MAX_POS, d_pos), dtype=jnp.float32)
    pe = pe.at[:, 0::2].set(jnp.sin(angles))
    pe = pe.at[:, 1::2].set(jnp.cos(angles))
    return pe


def pack_pe_table(pe: jnp.ndarray) -> jnp.ndarray:
    """One-time prep (the analogue of register_buffer).

    Returns pe_shift with shape (PACK, rows_pad, PACK*d_pos):
      slice p holds the (row-padded) table placed in lanes [p*d_pos, (p+1)*d_pos),
      zeros elsewhere, so  onehot(idx_p) @ pe_shift[p]  lands gathered row p of a
      packed output row directly in its lane slot (lane-dense, no in-kernel reshape).
    """
    rows, d_pos = pe.shape
    pack = 128 // d_pos if (d_pos < 128 and 128 % d_pos == 0) else 1
    lane_w = pack * d_pos
    rows_pad = pl.cdiv(rows, 128) * 128                      # 500 -> 512, (8,128)-aligned
    pe_pad = jnp.zeros((rows_pad, d_pos), jnp.float32).at[:rows].set(
        pe.astype(jnp.float32))
    shifted = []
    for p in range(pack):
        buf = jnp.zeros((rows_pad, lane_w), jnp.float32)
        shifted.append(buf.at[:, p * d_pos:(p + 1) * d_pos].set(pe_pad))
    return jnp.stack(shifted, axis=0)                        # (pack, rows_pad, lane_w)


def _gather_kernel(pos_ref, pe_ref, out_ref):
    # pos_ref: (T2, PACK) int32      -- PACK original indices per packed output row
    # pe_ref : (PACK, ROWS_PAD, LANE_W) f32, VMEM-resident shifted tables
    # out_ref: (T2, LANE_W) f32      -- lane-dense packed output slab
    t2, pack = pos_ref.shape
    _, rows_pad, lane_w = pe_ref.shape

    idx = jnp.clip(pos_ref[...], 0, MAX_POS - 1)                         # (t2, pack)
    col = jax.lax.broadcasted_iota(jnp.int32, (t2, rows_pad), 1)          # (t2, rows_pad)

    acc = jnp.zeros((t2, lane_w), jnp.float32)
    for p in range(pack):                                                 # static unroll
        onehot = (idx[:, p:p + 1] == col).astype(jnp.float32)             # (t2, rows_pad)
        acc = acc + jnp.dot(onehot, pe_ref[p],
                            preferred_element_type=jnp.float32)           # MXU, bit-exact
    out_ref[...] = acc


def positional_encoding(pos: jnp.ndarray, pe_shift: jnp.ndarray) -> jnp.ndarray:
    """pos: int array (B, S); pe_shift: output of pack_pe_table. Returns (B, S, d_pos) f32."""
    pack, rows_pad, lane_w = pe_shift.shape
    d_pos = lane_w // pack
    B, S = pos.shape
    n = B * S

    row_align = 8 * pack                                  # sublane alignment of packed rows
    n_align = pl.cdiv(n, row_align) * row_align
    tile = min(MAX_TILE_ROWS, n_align)                    # both are multiples of row_align
    n_pad = pl.cdiv(n, tile) * tile
    t2 = tile // pack                                     # packed output rows per grid step
    grid = (n_pad // tile,)

    pos_flat = pos.reshape(n).astype(jnp.int32)
    pos_in = jnp.zeros((n_pad,), jnp.int32).at[:n].set(pos_flat).reshape(n_pad // pack, pack)

    out_packed = pl.pallas_call(
        _gather_kernel,
        out_shape=jax.ShapeDtypeStruct((n_pad // pack, lane_w), jnp.float32),
        grid_spec=pltpu.PrefetchScalarGridSpec(
            num_scalar_prefetch=0,
            grid=grid,
            in_specs=[
                # Index tile for this slab of output rows.
                pl.BlockSpec((t2, pack), lambda i: (i, 0)),
                # Whole shifted table, same block every step -> loaded into VMEM once.
                pl.BlockSpec((pack, rows_pad, lane_w), lambda i: (0, 0, 0)),
            ],
            out_specs=pl.BlockSpec((t2, lane_w), lambda i: (i, 0)),
        ),
        compiler_params=pltpu.CompilerParams(
            # Independent output row tiles: let v7x shard the grid across its 2 TCs.
            dimension_semantics=("parallel",),
        ),
    )(pos_in, pe_shift)

    # Packed (n_pad//pack, pack*d_pos) rows are exactly row-major (n_pad, d_pos).
    out = out_packed.reshape(n_pad, d_pos)[:n].reshape(B, S, d_pos)
    return out


if __name__ == "__main__":
    d_pos = 32
    B, S = 2, 8

    pe = build_pe_table(d_pos)          # (500, 32), same values as the torch buffer
    pe_shift = pack_pe_table(pe)        # one-time packed/shifted table (4, 512, 128)

    key = jax.random.PRNGKey(0)
    pos = jax.random.randint(key, (B, S), minval=0, maxval=MAX_POS, dtype=jnp.int32)

    out = positional_encoding(pos, pe_shift)
    out = jax.block_until_ready(out)

    # Reference: plain JAX embedding lookup (bit-exact match expected).
    ref = jnp.take(pe, pos, axis=0)
    assert out.shape == (B, S, d_pos)
    assert out.dtype == jnp.float32
    assert jnp.array_equal(out, ref)

    print("KERNEL_OK")
</pallas_src>

<mosaic_0001>
module attributes {stable_mosaic.version = 11 : i64} {
  func.func @_gather_kernel(%arg0: i32, %arg1: memref<8x4xi32, #tpu.memory_space<vmem>>, %arg2: memref<4x512x128xf32, #tpu.memory_space<vmem>>, %arg3: memref<8x128xf32, #tpu.memory_space<vmem>>) attributes {dimension_semantics = [#tpu.dimension_semantics<parallel>], iteration_bounds = array<i64: 1>, scalar_prefetch = 0 : i64, scratch_operands = 0 : i64, tpu.core_type = #tpu.core_type<tc>, window_params = [{transform_indices = @transform_0, window_bounds = array<i64: 8, 4>}, {pipeline_mode = #tpu.pipeline_mode<synchronous>, transform_indices = @transform_1, window_bounds = array<i64: 4, 512, 128>}, {transform_indices = @transform_2, window_bounds = array<i64: 8, 128>}]} {
    %c0 = arith.constant 0 : index
    %c0_0 = arith.constant 0 : index
    %0 = vector.load %arg1[%c0, %c0_0] : memref<8x4xi32, #tpu.memory_space<vmem>>, vector<8x4xi32>
    %c0_i32 = arith.constant 0 : i32
    %c499_i32 = arith.constant 499 : i32
    %1 = vector.broadcast %c0_i32 : i32 to vector<8x4xi32>
    %2 = arith.maxsi %1, %0 : vector<8x4xi32>
    %3 = vector.broadcast %c499_i32 : i32 to vector<8x4xi32>
    %4 = arith.minsi %3, %2 : vector<8x4xi32>
    %5 = tpu.iota {dimensions = array<i32: 1>} : vector<8x512xi32>
    %cst = arith.constant 0.000000e+00 : f32
    %6 = vector.broadcast %cst : f32 to vector<8x128xf32>
    %7 = vector.extract_strided_slice %4 {offsets = [0, 0], sizes = [8, 1], strides = [1, 1]} : vector<8x4xi32> to vector<8x1xi32>
    %8 = vector.broadcast %7 : vector<8x1xi32> to vector<8x512xi32>
    %9 = arith.cmpi eq, %8, %5 : vector<8x512xi32>
    %10 = arith.extui %9 : vector<8x512xi1> to vector<8x512xi32>
    %11 = arith.sitofp %10 : vector<8x512xi32> to vector<8x512xf32>
    %c0_1 = arith.constant 0 : index
    %c0_2 = arith.constant 0 : index
    %c0_3 = arith.constant 0 : index
    %12 = vector.load %arg2[%c0_1, %c0_2, %c0_3] : memref<4x512x128xf32, #tpu.memory_space<vmem>>, vector<1x512x128xf32>
    %13 = vector.shape_cast %12 : vector<1x512x128xf32> to vector<512x128xf32>
    %cst_4 = arith.constant dense<0.000000e+00> : vector<8x128xf32>
    %14 = tpu.matmul %11, %13, %cst_4 {dimension_numbers = #tpu.dot_dimension_numbers<[1], [0], [0], [1], [0, 0, 1, 1], [], []>} : vector<8x512xf32>, vector<512x128xf32>, vector<8x128xf32> -> vector<8x128xf32>
    %15 = arith.addf %6, %14 : vector<8x128xf32>
    %16 = vector.extract_strided_slice %4 {offsets = [0, 1], sizes = [8, 1], strides = [1, 1]} : vector<8x4xi32> to vector<8x1xi32>
    %17 = vector.broadcast %16 : vector<8x1xi32> to vector<8x512xi32>
    %18 = arith.cmpi eq, %17, %5 : vector<8x512xi32>
    %19 = arith.extui %18 : vector<8x512xi1> to vector<8x512xi32>
    %20 = arith.sitofp %19 : vector<8x512xi32> to vector<8x512xf32>
    %c1 = arith.constant 1 : index
    %c0_5 = arith.constant 0 : index
    %c0_6 = arith.constant 0 : index
    %21 = vector.load %arg2[%c1, %c0_5, %c0_6] : memref<4x512x128xf32, #tpu.memory_space<vmem>>, vector<1x512x128xf32>
    %22 = vector.shape_cast %21 : vector<1x512x128xf32> to vector<512x128xf32>
    %cst_7 = arith.constant dense<0.000000e+00> : vector<8x128xf32>
    %23 = tpu.matmul %20, %22, %cst_7 {dimension_numbers = #tpu.dot_dimension_numbers<[1], [0], [0], [1], [0, 0, 1, 1], [], []>} : vector<8x512xf32>, vector<512x128xf32>, vector<8x128xf32> -> vector<8x128xf32>
    %24 = arith.addf %15, %23 : vector<8x128xf32>
    %25 = vector.extract_strided_slice %4 {offsets = [0, 2], sizes = [8, 1], strides = [1, 1]} : vector<8x4xi32> to vector<8x1xi32>
    %26 = vector.broadcast %25 : vector<8x1xi32> to vector<8x512xi32>
    %27 = arith.cmpi eq, %26, %5 : vector<8x512xi32>
    %28 = arith.extui %27 : vector<8x512xi1> to vector<8x512xi32>
    %29 = arith.sitofp %28 : vector<8x512xi32> to vector<8x512xf32>
    %c2 = arith.constant 2 : index
    %c0_8 = arith.constant 0 : index
    %c0_9 = arith.constant 0 : index
    %30 = vector.load %arg2[%c2, %c0_8, %c0_9] : memref<4x512x128xf32, #tpu.memory_space<vmem>>, vector<1x512x128xf32>
    %31 = vector.shape_cast %30 : vector<1x512x128xf32> to vector<512x128xf32>
    %cst_10 = arith.constant dense<0.000000e+00> : vector<8x128xf32>
    %32 = tpu.matmul %29, %31, %cst_10 {dimension_numbers = #tpu.dot_dimension_numbers<[1], [0], [0], [1], [0, 0, 1, 1], [], []>} : vector<8x512xf32>, vector<512x128xf32>, vector<8x128xf32> -> vector<8x128xf32>
    %33 = arith.addf %24, %32 : vector<8x128xf32>
    %34 = vector.extract_strided_slice %4 {offsets = [0, 3], sizes = [8, 1], strides = [1, 1]} : vector<8x4xi32> to vector<8x1xi32>
    %35 = vector.broadcast %34 : vector<8x1xi32> to vector<8x512xi32>
    %36 = arith.cmpi eq, %35, %5 : vector<8x512xi32>
    %37 = arith.extui %36 : vector<8x512xi1> to vector<8x512xi32>
    %38 = arith.sitofp %37 : vector<8x512xi32> to vector<8x512xf32>
    %c3 = arith.constant 3 : index
    %c0_11 = arith.constant 0 : index
    %c0_12 = arith.constant 0 : index
    %39 = vector.load %arg2[%c3, %c0_11, %c0_12] : memref<4x512x128xf32, #tpu.memory_space<vmem>>, vector<1x512x128xf32>
    %40 = vector.shape_cast %39 : vector<1x512x128xf32> to vector<512x128xf32>
    %cst_13 = arith.constant dense<0.000000e+00> : vector<8x128xf32>
    %41 = tpu.matmul %38, %40, %cst_13 {dimension_numbers = #tpu.dot_dimension_numbers<[1], [0], [0], [1], [0, 0, 1, 1], [], []>} : vector<8x512xf32>, vector<512x128xf32>, vector<8x128xf32> -> vector<8x128xf32>
    %42 = arith.addf %33, %41 : vector<8x128xf32>
    %c0_14 = arith.constant 0 : index
    %c0_15 = arith.constant 0 : index
    %43 = vector.load %arg3[%c0_14, %c0_15] : memref<8x128xf32, #tpu.memory_space<vmem>>, vector<8x128xf32>
    tpu.vector_store %arg3[%c0_14, %c0_15], %42 {strides = array<i32>} : memref<8x128xf32, #tpu.memory_space<vmem>>, vector<8x128xf32>,
    return
  }
  func.func @transform_0(%arg0: i32) -> (i32, i32) {
    %c0_i32 = arith.constant 0 : i32
    %c0_i32_0 = arith.constant 0 : i32
    return %arg0, %c0_i32 : i32, i32
  }
  func.func @transform_1(%arg0: i32) -> (i32, i32, i32) {
    %c0_i32 = arith.constant 0 : i32
    %c0_i32_0 = arith.constant 0 : i32
    %c0_i32_1 = arith.constant 0 : i32
    %c0_i32_2 = arith.constant 0 : i32
    return %c0_i32, %c0_i32_0, %c0_i32_1 : i32, i32, i32
  }
  func.func @transform_2(%arg0: i32) -> (i32, i32) {
    %c0_i32 = arith.constant 0 : i32
    %c0_i32_0 = arith.constant 0 : i32
    return %arg0, %c0_i32 : i32, i32
  }
}

</mosaic_0001>

<llo_original>
// kernel: tpu_custom_call.1
$region0: #{tpu_custom_call.1}
  #allocation0 [shape = 'u32[]', space=smem, size = 0x4, offset = 0x4, fixed_abs, tag = 'smem constant byte address 0x4 - core index']
  #allocation1 [shape = 'u32[72,128]{1,0:T(1,128)}', space=vmem, size = 0x9000, scoped, tag = 'internal scratch']
  %s0 = inlined_call_operand.vmem [shape: s32[8,4], index: 0, kind: input, shape index: {}]
  %s1 = inlined_call_operand.hbm [shape: f32[4,512,128], index: 1, kind: input, shape index: {}]
  %s2 = inlined_call_operand.hbm [shape: f32[8,128], index: 2, kind: output, shape index: {}]
  %s3 = sld [smem:[#allocation0]]
  $region22: #{tpu_custom_call.1} parent=0
    _
  %s5 = ssub.s32 1, %s3
  %s6 = scalar_select 0, %s5, %s3
  $region1: #{tpu_custom_call.1} parent=0
    #allocation2 [shape = 'u8[1048576]{0}', space=vmem, size = 0x100000, scoped, tag = 'input window, operand 1, single buffered']
    #allocation3 [shape = 's32[1]{0}', space=sflag, size = 0x4, scoped, tag = 'scoped memory for tpu_custom_call.1']
    #allocation4 [shape = 's32[1]{0}', space=sflag, size = 0x4, scoped, tag = 'scoped memory for tpu_custom_call.1']
    #allocation5 [shape = 'u8[4096]{0}', space=vmem, size = 0x1000, scoped, tag = 'output window, operand 0, single buffered']
    %7 = vsyncpa [#allocation3], 0
    %8 = vsyncpa [#allocation4], 0
    // Predicated region
    $region2: #{tpu_custom_call.1} parent=1 // pred_check
      _
    $region3: #{tpu_custom_call.1} parent=1 // pred_check_branch
      %10 = sbr.rel (0) target = $region5
    $region4: #{tpu_custom_call.1} parent=1 // pred_region
      _
    $region5: #{tpu_custom_call.1} parent=1 // pred_fallthru
      _
    // Predicated region
    $region6: #{tpu_custom_call.1} parent=1 // pred_check
      _
    $region7: #{tpu_custom_call.1} parent=1 // pred_check_branch
      %12 = sbr.rel (0) target = $region9
    $region8: #{tpu_custom_call.1} parent=1 // pred_region
      %14 = vsyncadd [#allocation3], 0
      %s15 = sshll.u32 %s1, 4
      %s16 = int_to_ptr.hbm [resolvable:$true] %s15
      %s17 = sshll.u32 [#allocation2], 4
      %s18 = int_to_ptr.vmem [resolvable:$true] %s17
      %23 = dma.hbm_to_vmem [thread:$0]  %s16, 32768, %s18, [#allocation3], 128, 128, 8
    $region9: #{tpu_custom_call.1} parent=1 // pred_fallthru
      _
    // Predicated region
    $region10: #{tpu_custom_call.1} parent=1 // pred_check
      _
    $region11: #{tpu_custom_call.1} parent=1 // pred_check_branch
      %25 = sbr.rel (0) target = $region13
    $region12: #{tpu_custom_call.1} parent=1 // pred_region
      %27 = dma.done [#allocation3], 32768
    $region13: #{tpu_custom_call.1} parent=1 // pred_fallthru
      _
    %v28 = vld [vmem:[%s0] sm:$0xff]
    %vm29 = vcmp.gt.s32.totalorder %v28, 0
    %v30 = vsel %vm29, %v28, 0
    %vm31 = vcmp.lt.s32.totalorder %v30, 499
    %v32 = vsel %vm31, %v30, 499
    %v33 = vlaneseq
    %v34 = vand.u32 %v33, 127
    %v35 = vadd.s32 %v34, 128
    %v36 = vadd.s32 %v34, 256
    %v37 = vadd.s32 %v34, 384
    %38 = vset.pattern.permute.xlu0 0
    %39 = vperm.xlu0 %38, %v32
    %v40 = vpop.permute.xlu0 %39
    %vm41 = vcmp.eq.s32.totalorder %v40, %v34
    %vm42 = vcmp.eq.s32.totalorder %v40, %v35
    %vm43 = vcmp.eq.s32.totalorder %v40, %v36
    %vm44 = vcmp.eq.s32.totalorder %v40, %v37
    %v45 = vsel %vm41, 1, 0
    %v46 = vsel %vm42, 1, 0
    %v47 = vsel %vm43, 1, 0
    %v48 = vsel %vm44, 1, 0
    %v49 = vcvt.s32.f32 %v45
    %v50 = vcvt.s32.f32 %v46
    %v51 = vcvt.s32.f32 %v47
    %v52 = vcvt.s32.f32 %v48
    %v53 = vld [vmem:[#allocation2] sm:$0xff]
    %v54 = vld [vmem:[#allocation2 + $0x8] sm:$0xff]
    %v55 = vld [vmem:[#allocation2 + $0x10] sm:$0xff]
    %v56 = vld [vmem:[#allocation2 + $0x18] sm:$0xff]
    %v57 = vld [vmem:[#allocation2 + $0x20] sm:$0xff]
    %v58 = vld [vmem:[#allocation2 + $0x28] sm:$0xff]
    %v59 = vld [vmem:[#allocation2 + $0x30] sm:$0xff]
    %v60 = vld [vmem:[#allocation2 + $0x38] sm:$0xff]
    %v61 = vld [vmem:[#allocation2 + $0x40] sm:$0xff]
    %v62 = vld [vmem:[#allocation2 + $0x48] sm:$0xff]
    %v63 = vld [vmem:[#allocation2 + $0x50] sm:$0xff]
    %v64 = vld [vmem:[#allocation2 + $0x58] sm:$0xff]
    %v65 = vld [vmem:[#allocation2 + $0x60] sm:$0xff]
    %v66 = vld [vmem:[#allocation2 + $0x68] sm:$0xff]
    %v67 = vld [vmem:[#allocation2 + $0x70] sm:$0xff]
    %v68 = vld [vmem:[#allocation2 + $0x78] sm:$0xff]
    %v69 = vld [vmem:[#allocation2 + $0x80] sm:$0xff]
    %v70 = vld [vmem:[#allocation2 + $0x88] sm:$0xff]
    %v71 = vld [vmem:[#allocation2 + $0x90] sm:$0xff]
    %v72 = vld [vmem:[#allocation2 + $0x98] sm:$0xff]
    %v73 = vld [vmem:[#allocation2 + $0xa0] sm:$0xff]
    %v74 = vld [vmem:[#allocation2 + $0xa8] sm:$0xff]
    %v75 = vld [vmem:[#allocation2 + $0xb0] sm:$0xff]
    %v76 = vld [vmem:[#allocation2 + $0xb8] sm:$0xff]
    %v77 = vld [vmem:[#allocation2 + $0xc0] sm:$0xff]
    %v78 = vld [vmem:[#allocation2 + $0xc8] sm:$0xff]
    %v79 = vld [vmem:[#allocation2 + $0xd0] sm:$0xff]
    %v80 = vld [vmem:[#allocation2 + $0xd8] sm:$0xff]
    %v81 = vld [vmem:[#allocation2 + $0xe0] sm:$0xff]
    %v82 = vld [vmem:[#allocation2 + $0xe8] sm:$0xff]
    %v83 = vld [vmem:[#allocation2 + $0xf0] sm:$0xff]
    %v84 = vld [vmem:[#allocation2 + $0xf8] sm:$0xff]
    %v85 = vld [vmem:[#allocation2 + $0x100] sm:$0xff]
    %v86 = vld [vmem:[#allocation2 + $0x108] sm:$0xff]
    %v87 = vld [vmem:[#allocation2 + $0x110] sm:$0xff]
    %v88 = vld [vmem:[#allocation2 + $0x118] sm:$0xff]
    %v89 = vld [vmem:[#allocation2 + $0x120] sm:$0xff]
    %v90 = vld [vmem:[#allocation2 + $0x128] sm:$0xff]
    %v91 = vld [vmem:[#allocation2 + $0x130] sm:$0xff]
    %v92 = vld [vmem:[#allocation2 + $0x138] sm:$0xff]
    %v93 = vld [vmem:[#allocation2 + $0x140] sm:$0xff]
    %v94 = vld [vmem:[#allocation2 + $0x148] sm:$0xff]
    %v95 = vld [vmem:[#allocation2 + $0x150] sm:$0xff]
    %v96 = vld [vmem:[#allocation2 + $0x158] sm:$0xff]
    %v97 = vld [vmem:[#allocation2 + $0x160] sm:$0xff]
    %v98 = vld [vmem:[#allocation2 + $0x168] sm:$0xff]
    %v99 = vld [vmem:[#allocation2 + $0x170] sm:$0xff]
    %v100 = vld [vmem:[#allocation2 + $0x178] sm:$0xff]
    %v101 = vld [vmem:[#allocation2 + $0x180] sm:$0xff]
    %v102 = vld [vmem:[#allocation2 + $0x188] sm:$0xff]
    %v103 = vld [vmem:[#allocation2 + $0x190] sm:$0xff]
    %v104 = vld [vmem:[#allocation2 + $0x198] sm:$0xff]
    %v105 = vld [vmem:[#allocation2 + $0x1a0] sm:$0xff]
    %v106 = vld [vmem:[#allocation2 + $0x1a8] sm:$0xff]
    %v107 = vld [vmem:[#allocation2 + $0x1b0] sm:$0xff]
    %v108 = vld [vmem:[#allocation2 + $0x1b8] sm:$0xff]
    %v109 = vld [vmem:[#allocation2 + $0x1c0] sm:$0xff]
    %v110 = vld [vmem:[#allocation2 + $0x1c8] sm:$0xff]
    %v111 = vld [vmem:[#allocation2 + $0x1d0] sm:$0xff]
    %v112 = vld [vmem:[#allocation2 + $0x1d8] sm:$0xff]
    %v113 = vld [vmem:[#allocation2 + $0x1e0] sm:$0xff]
    %v114 = vld [vmem:[#allocation2 + $0x1e8] sm:$0xff]
    %v115 = vld [vmem:[#allocation2 + $0x1f0] sm:$0xff]
    %v116 = vld [vmem:[#allocation2 + $0x1f8] sm:$0xff]
    %117 = vset.pattern.permute.xlu0 1
    %118 = vperm.xlu0 %117, %v32
    %v119 = vpop.permute.xlu0 %118
    %vm120 = vcmp.eq.s32.totalorder %v119, %v34
    %vm121 = vcmp.eq.s32.totalorder %v119, %v35
    %vm122 = vcmp.eq.s32.totalorder %v119, %v36
    %vm123 = vcmp.eq.s32.totalorder %v119, %v37
    %v124 = vsel %vm120, 1, 0
    %v125 = vsel %vm121, 1, 0
    %v126 = vsel %vm122, 1, 0
    %v127 = vsel %vm123, 1, 0
    %v128 = vcvt.s32.f32 %v124
    %v129 = vcvt.s32.f32 %v125
    %v130 = vcvt.s32.f32 %v126
    %v131 = vcvt.s32.f32 %v127
    %s132 = scalar_lea.vmem [#allocation2], 512
    %v133 = vld [vmem:[%s132] sm:$0xff]
    %v134 = vld [vmem:[%s132 + $0x8] sm:$0xff]
    %v135 = vld [vmem:[%s132 + $0x10] sm:$0xff]
    %v136 = vld [vmem:[%s132 + $0x18] sm:$0xff]
    %v137 = vld [vmem:[%s132 + $0x20] sm:$0xff]
    %v138 = vld [vmem:[%s132 + $0x28] sm:$0xff]
    %v139 = vld [vmem:[%s132 + $0x30] sm:$0xff]
    %v140 = vld [vmem:[%s132 + $0x38] sm:$0xff]
    %v141 = vld [vmem:[%s132 + $0x40] sm:$0xff]
    %v142 = vld [vmem:[%s132 + $0x48] sm:$0xff]
    %v143 = vld [vmem:[%s132 + $0x50] sm:$0xff]
    %v144 = vld [vmem:[%s132 + $0x58] sm:$0xff]
    %v145 = vld [vmem:[%s132 + $0x60] sm:$0xff]
    %v146 = vld [vmem:[%s132 + $0x68] sm:$0xff]
    %v147 = vld [vmem:[%s132 + $0x70] sm:$0xff]
    %v148 = vld [vmem:[%s132 + $0x78] sm:$0xff]
    %v149 = vld [vmem:[%s132 + $0x80] sm:$0xff]
    %v150 = vld [vmem:[%s132 + $0x88] sm:$0xff]
    %v151 = vld [vmem:[%s132 + $0x90] sm:$0xff]
    %v152 = vld [vmem:[%s132 + $0x98] sm:$0xff]
    %v153 = vld [vmem:[%s132 + $0xa0] sm:$0xff]
    %v154 = vld [vmem:[%s132 + $0xa8] sm:$0xff]
    %v155 = vld [vmem:[%s132 + $0xb0] sm:$0xff]
    %v156 = vld [vmem:[%s132 + $0xb8] sm:$0xff]
    %v157 = vld [vmem:[%s132 + $0xc0] sm:$0xff]
    %v158 = vld [vmem:[%s132 + $0xc8] sm:$0xff]
    %v159 = vld [vmem:[%s132 + $0xd0] sm:$0xff]
    %v160 = vld [vmem:[%s132 + $0xd8] sm:$0xff]
    %v161 = vld [vmem:[%s132 + $0xe0] sm:$0xff]
    %v162 = vld [vmem:[%s132 + $0xe8] sm:$0xff]
    %v163 = vld [vmem:[%s132 + $0xf0] sm:$0xff]
    %v164 = vld [vmem:[%s132 + $0xf8] sm:$0xff]
    %v165 = vld [vmem:[%s132 + $0x100] sm:$0xff]
    %v166 = vld [vmem:[%s132 + $0x108] sm:$0xff]
    %v167 = vld [vmem:[%s132 + $0x110] sm:$0xff]
    %v168 = vld [vmem:[%s132 + $0x118] sm:$0xff]
    %v169 = vld [vmem:[%s132 + $0x120] sm:$0xff]
    %v170 = vld [vmem:[%s132 + $0x128] sm:$0xff]
    %v171 = vld [vmem:[%s132 + $0x130] sm:$0xff]
    %v172 = vld [vmem:[%s132 + $0x138] sm:$0xff]
    %v173 = vld [vmem:[%s132 + $0x140] sm:$0xff]
    %v174 = vld [vmem:[%s132 + $0x148] sm:$0xff]
    %v175 = vld [vmem:[%s132 + $0x150] sm:$0xff]
    %v176 = vld [vmem:[%s132 + $0x158] sm:$0xff]
    %v177 = vld [vmem:[%s132 + $0x160] sm:$0xff]
    %v178 = vld [vmem:[%s132 + $0x168] sm:$0xff]
    %v179 = vld [vmem:[%s132 + $0x170] sm:$0xff]
    %v180 = vld [vmem:[%s132 + $0x178] sm:$0xff]
    %v181 = vld [vmem:[%s132 + $0x180] sm:$0xff]
    %v182 = vld [vmem:[%s132 + $0x188] sm:$0xff]
    %v183 = vld [vmem:[%s132 + $0x190] sm:$0xff]
    %v184 = vld [vmem:[%s132 + $0x198] sm:$0xff]
    %v185 = vld [vmem:[%s132 + $0x1a0] sm:$0xff]
    %v186 = vld [vmem:[%s132 + $0x1a8] sm:$0xff]
    %v187 = vld [vmem:[%s132 + $0x1b0] sm:$0xff]
    %v188 = vld [vmem:[%s132 + $0x1b8] sm:$0xff]
    %v189 = vld [vmem:[%s132 + $0x1c0] sm:$0xff]
    %v190 = vld [vmem:[%s132 + $0x1c8] sm:$0xff]
    %v191 = vld [vmem:[%s132 + $0x1d0] sm:$0xff]
    %v192 = vld [vmem:[%s132 + $0x1d8] sm:$0xff]
    %v193 = vld [vmem:[%s132 + $0x1e0] sm:$0xff]
    %v194 = vld [vmem:[%s132 + $0x1e8] sm:$0xff]
    %v195 = vld [vmem:[%s132 + $0x1f0] sm:$0xff]
    %v196 = vld [vmem:[%s132 + $0x1f8] sm:$0xff]
    %197 = vmatpush.msra.mxu0 %v148
    %198 = vmatpush.msra.mxu0 %v147
    %199 = vmatpush.msra.mxu0 %v146
    %200 = vmatpush.msra.mxu0 %v145
    %201 = vmatpush.msra.mxu0 %v144
    %202 = vmatpush.msra.mxu0 %v143
    %203 = vmatpush.msra.mxu0 %v142
    %204 = vmatpush.msra.mxu0 %v141
    %205 = vmatpush.msra.mxu0 %v140
    %206 = vmatpush.msra.mxu0 %v139
    %207 = vmatpush.msra.mxu0 %v138
    %208 = vmatpush.msra.mxu0 %v137
    %209 = vmatpush.msra.mxu0 %v136
    %210 = vmatpush.msra.mxu0 %v135
    %211 = vmatpush.msra.mxu0 %v134
    %212 = vmatpush.msra.mxu0 %v133
    %213 = vmatmul.f32.gmra.mxu0 %v128
    %v214 = vpop.f32.mrf.mxu0
    %v215 = vadd.f32 0.0, %v214
    %216 = vdwg.mxu0
    %217 = vmatpush.msra.mxu0 %v164
    %218 = vmatpush.msra.mxu0 %v163
    %219 = vmatpush.msra.mxu0 %v162
    %220 = vmatpush.msra.mxu0 %v161
    %221 = vmatpush.msra.mxu0 %v160
    %222 = vmatpush.msra.mxu0 %v159
    %223 = vmatpush.msra.mxu0 %v158
    %224 = vmatpush.msra.mxu0 %v157
    %225 = vmatpush.msra.mxu0 %v156
    %226 = vmatpush.msra.mxu0 %v155
    %227 = vmatpush.msra.mxu0 %v154
    %228 = vmatpush.msra.mxu0 %v153
    %229 = vmatpush.msra.mxu0 %v152
    %230 = vmatpush.msra.mxu0 %v151
    %231 = vmatpush.msra.mxu0 %v150
    %232 = vmatpush.msra.mxu0 %v149
    %233 = vmatmul.f32.gmra.mxu0 %v129
    %v234 = vpop.f32.mrf.mxu0
    %v235 = vadd.f32 %v215, %v234
    %236 = vdwg.mxu0
    %237 = vmatpush.msra.mxu0 %v180
    %238 = vmatpush.msra.mxu0 %v179
    %239 = vmatpush.msra.mxu0 %v178
    %240 = vmatpush.msra.mxu0 %v177
    %241 = vmatpush.msra.mxu0 %v176
    %242 = vmatpush.msra.mxu0 %v175
    %243 = vmatpush.msra.mxu0 %v174
    %244 = vmatpush.msra.mxu0 %v173
    %245 = vmatpush.msra.mxu0 %v172
    %246 = vmatpush.msra.mxu0 %v171
    %247 = vmatpush.msra.mxu0 %v170
    %248 = vmatpush.msra.mxu0 %v169
    %249 = vmatpush.msra.mxu0 %v168
    %250 = vmatpush.msra.mxu0 %v167
    %251 = vmatpush.msra.mxu0 %v166
    %252 = vmatpush.msra.mxu0 %v165
    %253 = vmatmul.f32.gmra.mxu0 %v130
    %v254 = vpop.f32.mrf.mxu0
    %v255 = vadd.f32 %v235, %v254
    %256 = vdwg.mxu0
    %257 = vmatpush.msra.mxu0 %v196
    %258 = vmatpush.msra.mxu0 %v195
    %259 = vmatpush.msra.mxu0 %v194
    %260 = vmatpush.msra.mxu0 %v193
    %261 = vmatpush.msra.mxu0 %v192
    %262 = vmatpush.msra.mxu0 %v191
    %263 = vmatpush.msra.mxu0 %v190
    %264 = vmatpush.msra.mxu0 %v189
    %265 = vmatpush.msra.mxu0 %v188
    %266 = vmatpush.msra.mxu0 %v187
    %267 = vmatpush.msra.mxu0 %v186
    %268 = vmatpush.msra.mxu0 %v185
    %269 = vmatpush.msra.mxu0 %v184
    %270 = vmatpush.msra.mxu0 %v183
    %271 = vmatpush.msra.mxu0 %v182
    %272 = vmatpush.msra.mxu0 %v181
    %273 = vmatmul.f32.gmra.mxu0 %v131
    %v274 = vpop.f32.mrf.mxu0
    %v275 = vadd.f32 %v255, %v274
    %276 = vdwg.mxu0
    %277 = vmatpush.msra.mxu0 %v68
    %278 = vmatpush.msra.mxu0 %v67
    %279 = vmatpush.msra.mxu0 %v66
    %280 = vmatpush.msra.mxu0 %v65
    %281 = vmatpush.msra.mxu0 %v64
    %282 = vmatpush.msra.mxu0 %v63
    %283 = vmatpush.msra.mxu0 %v62
    %284 = vmatpush.msra.mxu0 %v61
    %285 = vmatpush.msra.mxu0 %v60
    %286 = vmatpush.msra.mxu0 %v59
    %287 = vmatpush.msra.mxu0 %v58
    %288 = vmatpush.msra.mxu0 %v57
    %289 = vmatpush.msra.mxu0 %v56
    %290 = vmatpush.msra.mxu0 %v55
    %291 = vmatpush.msra.mxu0 %v54
    %292 = vmatpush.msra.mxu0 %v53
    %293 = vmatmul.f32.gmra.mxu0 %v49
    %v294 = vpop.f32.mrf.mxu0
    %v295 = vadd.f32 %v275, %v294
    %296 = vdwg.mxu0
    %297 = vmatpush.msra.mxu0 %v84
    %298 = vmatpush.msra.mxu0 %v83
    %299 = vmatpush.msra.mxu0 %v82
    %300 = vmatpush.msra.mxu0 %v81
    %301 = vmatpush.msra.mxu0 %v80
    %302 = vmatpush.msra.mxu0 %v79
    %303 = vmatpush.msra.mxu0 %v78
    %304 = vmatpush.msra.mxu0 %v77
    %305 = vmatpush.msra.mxu0 %v76
    %306 = vmatpush.msra.mxu0 %v75
    %307 = vmatpush.msra.mxu0 %v74
    %308 = vmatpush.msra.mxu0 %v73
    %309 = vmatpush.msra.mxu0 %v72
    %310 = vmatpush.msra.mxu0 %v71
    %311 = vmatpush.msra.mxu0 %v70
    %312 = vmatpush.msra.mxu0 %v69
    %313 = vmatmul.f32.gmra.mxu0 %v50
    %v314 = vpop.f32.mrf.mxu0
    %v315 = vadd.f32 %v295, %v314
    %316 = vdwg.mxu0
    %317 = vmatpush.msra.mxu0 %v100
    %318 = vmatpush.msra.mxu0 %v99
    %319 = vmatpush.msra.mxu0 %v98
    %320 = vmatpush.msra.mxu0 %v97
    %321 = vmatpush.msra.mxu0 %v96
    %322 = vmatpush.msra.mxu0 %v95
    %323 = vmatpush.msra.mxu0 %v94
    %324 = vmatpush.msra.mxu0 %v93
    %325 = vmatpush.msra.mxu0 %v92
    %326 = vmatpush.msra.mxu0 %v91
    %327 = vmatpush.msra.mxu0 %v90
    %328 = vmatpush.msra.mxu0 %v89
    %329 = vmatpush.msra.mxu0 %v88
    %330 = vmatpush.msra.mxu0 %v87
    %331 = vmatpush.msra.mxu0 %v86
    %332 = vmatpush.msra.mxu0 %v85
    %333 = vmatmul.f32.gmra.mxu0 %v51
    %v334 = vpop.f32.mrf.mxu0
    %v335 = vadd.f32 %v315, %v334
    %336 = vdwg.mxu0
    %337 = vmatpush.msra.mxu0 %v116
    %338 = vmatpush.msra.mxu0 %v115
    %339 = vmatpush.msra.mxu0 %v114
    %340 = vmatpush.msra.mxu0 %v113
    %341 = vmatpush.msra.mxu0 %v112
    %342 = vmatpush.msra.mxu0 %v111
    %343 = vmatpush.msra.mxu0 %v110
    %344 = vmatpush.msra.mxu0 %v109
    %345 = vmatpush.msra.mxu0 %v108
    %346 = vmatpush.msra.mxu0 %v107
    %347 = vmatpush.msra.mxu0 %v106
    %348 = vmatpush.msra.mxu0 %v105
    %349 = vmatpush.msra.mxu0 %v104
    %350 = vmatpush.msra.mxu0 %v103
    %351 = vmatpush.msra.mxu0 %v102
    %352 = vmatpush.msra.mxu0 %v101
    %353 = vmatmul.f32.gmra.mxu0 %v52
    %v354 = vpop.f32.mrf.mxu0
    %v355 = vadd.f32 %v335, %v354
    %356 = vdwg.mxu0
    %357 = vset.pattern.permute.xlu0 2
    %358 = vperm.xlu0 %357, %v32
    %v359 = vpop.permute.xlu0 %358
    %vm360 = vcmp.eq.s32.totalorder %v359, %v34
    %vm361 = vcmp.eq.s32.totalorder %v359, %v35
    %vm362 = vcmp.eq.s32.totalorder %v359, %v36
    %vm363 = vcmp.eq.s32.totalorder %v359, %v37
    %v364 = vsel %vm360, 1, 0
    %v365 = vsel %vm361, 1, 0
    %v366 = vsel %vm362, 1, 0
    %v367 = vsel %vm363, 1, 0
    %v368 = vcvt.s32.f32 %v364
    %v369 = vcvt.s32.f32 %v365
    %v370 = vcvt.s32.f32 %v366
    %v371 = vcvt.s32.f32 %v367
    %s372 = scalar_lea.vmem [#allocation2], 1024
    %v373 = vld [vmem:[%s372] sm:$0xff]
    %v374 = vld [vmem:[%s372 + $0x8] sm:$0xff]
    %v375 = vld [vmem:[%s372 + $0x10] sm:$0xff]
    %v376 = vld [vmem:[%s372 + $0x18] sm:$0xff]
    %v377 = vld [vmem:[%s372 + $0x20] sm:$0xff]
    %v378 = vld [vmem:[%s372 + $0x28] sm:$0xff]
    %v379 = vld [vmem:[%s372 + $0x30] sm:$0xff]
    %v380 = vld [vmem:[%s372 + $0x38] sm:$0xff]
    %v381 = vld [vmem:[%s372 + $0x40] sm:$0xff]
    %v382 = vld [vmem:[%s372 + $0x48] sm:$0xff]
    %v383 = vld [vmem:[%s372 + $0x50] sm:$0xff]
    %v384 = vld [vmem:[%s372 + $0x58] sm:$0xff]
    %v385 = vld [vmem:[%s372 + $0x60] sm:$0xff]
    %v386 = vld [vmem:[%s372 + $0x68] sm:$0xff]
    %v387 = vld [vmem:[%s372 + $0x70] sm:$0xff]
    %v388 = vld [vmem:[%s372 + $0x78] sm:$0xff]
    %v389 = vld [vmem:[%s372 + $0x80] sm:$0xff]
    %v390 = vld [vmem:[%s372 + $0x88] sm:$0xff]
    %v391 = vld [vmem:[%s372 + $0x90] sm:$0xff]
    %v392 = vld [vmem:[%s372 + $0x98] sm:$0xff]
    %v393 = vld [vmem:[%s372 + $0xa0] sm:$0xff]
    %v394 = vld [vmem:[%s372 + $0xa8] sm:$0xff]
    %v395 = vld [vmem:[%s372 + $0xb0] sm:$0xff]
    %v396 = vld [vmem:[%s372 + $0xb8] sm:$0xff]
    %v397 = vld [vmem:[%s372 + $0xc0] sm:$0xff]
    %v398 = vld [vmem:[%s372 + $0xc8] sm:$0xff]
    %v399 = vld [vmem:[%s372 + $0xd0] sm:$0xff]
    %v400 = vld [vmem:[%s372 + $0xd8] sm:$0xff]
    %v401 = vld [vmem:[%s372 + $0xe0] sm:$0xff]
    %v402 = vld [vmem:[%s372 + $0xe8] sm:$0xff]
    %v403 = vld [vmem:[%s372 + $0xf0] sm:$0xff]
    %v404 = vld [vmem:[%s372 + $0xf8] sm:$0xff]
    %v405 = vld [vmem:[%s372 + $0x100] sm:$0xff]
    %v406 = vld [vmem:[%s372 + $0x108] sm:$0xff]
    %v407 = vld [vmem:[%s372 + $0x110] sm:$0xff]
    %v408 = vld [vmem:[%s372 + $0x118] sm:$0xff]
    %v409 = vld [vmem:[%s372 + $0x120] sm:$0xff]
    %v410 = vld [vmem:[%s372 + $0x128] sm:$0xff]
    %v411 = vld [vmem:[%s372 + $0x130] sm:$0xff]
    %v412 = vld [vmem:[%s372 + $0x138] sm:$0xff]
    %v413 = vld [vmem:[%s372 + $0x140] sm:$0xff]
    %v414 = vld [vmem:[%s372 + $0x148] sm:$0xff]
    %v415 = vld [vmem:[%s372 + $0x150] sm:$0xff]
    %v416 = vld [vmem:[%s372 + $0x158] sm:$0xff]
    %v417 = vld [vmem:[%s372 + $0x160] sm:$0xff]
    %v418 = vld [vmem:[%s372 + $0x168] sm:$0xff]
    %v419 = vld [vmem:[%s372 + $0x170] sm:$0xff]
    %v420 = vld [vmem:[%s372 + $0x178] sm:$0xff]
    %v421 = vld [vmem:[%s372 + $0x180] sm:$0xff]
    %v422 = vld [vmem:[%s372 + $0x188] sm:$0xff]
    %v423 = vld [vmem:[%s372 + $0x190] sm:$0xff]
    %v424 = vld [vmem:[%s372 + $0x198] sm:$0xff]
    %v425 = vld [vmem:[%s372 + $0x1a0] sm:$0xff]
    %v426 = vld [vmem:[%s372 + $0x1a8] sm:$0xff]
    %v427 = vld [vmem:[%s372 + $0x1b0] sm:$0xff]
    %v428 = vld [vmem:[%s372 + $0x1b8] sm:$0xff]
    %v429 = vld [vmem:[%s372 + $0x1c0] sm:$0xff]
    %v430 = vld [vmem:[%s372 + $0x1c8] sm:$0xff]
    %v431 = vld [vmem:[%s372 + $0x1d0] sm:$0xff]
    %v432 = vld [vmem:[%s372 + $0x1d8] sm:$0xff]
    %v433 = vld [vmem:[%s372 + $0x1e0] sm:$0xff]
    %v434 = vld [vmem:[%s372 + $0x1e8] sm:$0xff]
    %v435 = vld [vmem:[%s372 + $0x1f0] sm:$0xff]
    %v436 = vld [vmem:[%s372 + $0x1f8] sm:$0xff]
    %437 = vmatpush.msra.mxu0 %v388
    %438 = vmatpush.msra.mxu0 %v387
    %439 = vmatpush.msra.mxu0 %v386
    %440 = vmatpush.msra.mxu0 %v385
    %441 = vmatpush.msra.mxu0 %v384
    %442 = vmatpush.msra.mxu0 %v383
    %443 = vmatpush.msra.mxu0 %v382
    %444 = vmatpush.msra.mxu0 %v381
    %445 = vmatpush.msra.mxu0 %v380
    %446 = vmatpush.msra.mxu0 %v379
    %447 = vmatpush.msra.mxu0 %v378
    %448 = vmatpush.msra.mxu0 %v377
    %449 = vmatpush.msra.mxu0 %v376
    %450 = vmatpush.msra.mxu0 %v375
    %451 = vmatpush.msra.mxu0 %v374
    %452 = vmatpush.msra.mxu0 %v373
    %453 = vmatmul.f32.gmra.mxu0 %v368
    %v454 = vpop.f32.mrf.mxu0
    %v455 = vadd.f32 0.0, %v454
    %456 = vdwg.mxu0
    %457 = vmatpush.msra.mxu0 %v404
    %458 = vmatpush.msra.mxu0 %v403
    %459 = vmatpush.msra.mxu0 %v402
    %460 = vmatpush.msra.mxu0 %v401
    %461 = vmatpush.msra.mxu0 %v400
    %462 = vmatpush.msra.mxu0 %v399
    %463 = vmatpush.msra.mxu0 %v398
    %464 = vmatpush.msra.mxu0 %v397
    %465 = vmatpush.msra.mxu0 %v396
    %466 = vmatpush.msra.mxu0 %v395
    %467 = vmatpush.msra.mxu0 %v394
    %468 = vmatpush.msra.mxu0 %v393
    %469 = vmatpush.msra.mxu0 %v392
    %470 = vmatpush.msra.mxu0 %v391
    %471 = vmatpush.msra.mxu0 %v390
    %472 = vmatpush.msra.mxu0 %v389
    %473 = vmatmul.f32.gmra.mxu0 %v369
    %v474 = vpop.f32.mrf.mxu0
    %v475 = vadd.f32 %v455, %v474
    %476 = vdwg.mxu0
    %477 = vmatpush.msra.mxu0 %v420
    %478 = vmatpush.msra.mxu0 %v419
    %479 = vmatpush.msra.mxu0 %v418
    %480 = vmatpush.msra.mxu0 %v417
    %481 = vmatpush.msra.mxu0 %v416
    %482 = vmatpush.msra.mxu0 %v415
    %483 = vmatpush.msra.mxu0 %v414
    %484 = vmatpush.msra.mxu0 %v413
    %485 = vmatpush.msra.mxu0 %v412
    %486 = vmatpush.msra.mxu0 %v411
    %487 = vmatpush.msra.mxu0 %v410
    %488 = vmatpush.msra.mxu0 %v409
    %489 = vmatpush.msra.mxu0 %v408
    %490 = vmatpush.msra.mxu0 %v407
    %491 = vmatpush.msra.mxu0 %v406
    %492 = vmatpush.msra.mxu0 %v405
    %493 = vmatmul.f32.gmra.mxu0 %v370
    %v494 = vpop.f32.mrf.mxu0
    %v495 = vadd.f32 %v475, %v494
    %496 = vdwg.mxu0
    %497 = vmatpush.msra.mxu0 %v436
    %498 = vmatpush.msra.mxu0 %v435
    %499 = vmatpush.msra.mxu0 %v434
    %500 = vmatpush.msra.mxu0 %v433
    %501 = vmatpush.msra.mxu0 %v432
    %502 = vmatpush.msra.mxu0 %v431
    %503 = vmatpush.msra.mxu0 %v430
    %504 = vmatpush.msra.mxu0 %v429
    %505 = vmatpush.msra.mxu0 %v428
    %506 = vmatpush.msra.mxu0 %v427
    %507 = vmatpush.msra.mxu0 %v426
    %508 = vmatpush.msra.mxu0 %v425
    %509 = vmatpush.msra.mxu0 %v424
    %510 = vmatpush.msra.mxu0 %v423
    %511 = vmatpush.msra.mxu0 %v422
    %512 = vmatpush.msra.mxu0 %v421
    %513 = vmatmul.f32.gmra.mxu0 %v371
    %v514 = vpop.f32.mrf.mxu0
    %v515 = vadd.f32 %v495, %v514
    %516 = vdwg.mxu0
    %v517 = vadd.f32 %v355, %v515
    %518 = vset.pattern.permute.xlu0 3
    %519 = vperm.xlu0 %518, %v32
    %v520 = vpop.permute.xlu0 %519
    %vm521 = vcmp.eq.s32.totalorder %v520, %v34
    %vm522 = vcmp.eq.s32.totalorder %v520, %v35
    %vm523 = vcmp.eq.s32.totalorder %v520, %v36
    %vm524 = vcmp.eq.s32.totalorder %v520, %v37
    %v525 = vsel %vm521, 1, 0
    %v526 = vsel %vm522, 1, 0
    %v527 = vsel %vm523, 1, 0
    %v528 = vsel %vm524, 1, 0
    %v529 = vcvt.s32.f32 %v525
    %v530 = vcvt.s32.f32 %v526
    %v531 = vcvt.s32.f32 %v527
    %v532 = vcvt.s32.f32 %v528
    %s533 = scalar_lea.vmem [#allocation2], 1536
    %v534 = vld [vmem:[%s533] sm:$0xff]
    %v535 = vld [vmem:[%s533 + $0x8] sm:$0xff]
    %v536 = vld [vmem:[%s533 + $0x10] sm:$0xff]
    %v537 = vld [vmem:[%s533 + $0x18] sm:$0xff]
    %v538 = vld [vmem:[%s533 + $0x20] sm:$0xff]
    %v539 = vld [vmem:[%s533 + $0x28] sm:$0xff]
    %v540 = vld [vmem:[%s533 + $0x30] sm:$0xff]
    %v541 = vld [vmem:[%s533 + $0x38] sm:$0xff]
    %v542 = vld [vmem:[%s533 + $0x40] sm:$0xff]
    %v543 = vld [vmem:[%s533 + $0x48] sm:$0xff]
    %v544 = vld [vmem:[%s533 + $0x50] sm:$0xff]
    %v545 = vld [vmem:[%s533 + $0x58] sm:$0xff]
    %v546 = vld [vmem:[%s533 + $0x60] sm:$0xff]
    %v547 = vld [vmem:[%s533 + $0x68] sm:$0xff]
    %v548 = vld [vmem:[%s533 + $0x70] sm:$0xff]
    %v549 = vld [vmem:[%s533 + $0x78] sm:$0xff]
    %v550 = vld [vmem:[%s533 + $0x80] sm:$0xff]
    %v551 = vld [vmem:[%s533 + $0x88] sm:$0xff]
    %v552 = vld [vmem:[%s533 + $0x90] sm:$0xff]
    %v553 = vld [vmem:[%s533 + $0x98] sm:$0xff]
    %v554 = vld [vmem:[%s533 + $0xa0] sm:$0xff]
    %v555 = vld [vmem:[%s533 + $0xa8] sm:$0xff]
    %v556 = vld [vmem:[%s533 + $0xb0] sm:$0xff]
    %v557 = vld [vmem:[%s533 + $0xb8] sm:$0xff]
    %v558 = vld [vmem:[%s533 + $0xc0] sm:$0xff]
    %v559 = vld [vmem:[%s533 + $0xc8] sm:$0xff]
    %v560 = vld [vmem:[%s533 + $0xd0] sm:$0xff]
    %v561 = vld [vmem:[%s533 + $0xd8] sm:$0xff]
    %v562 = vld [vmem:[%s533 + $0xe0] sm:$0xff]
    %v563 = vld [vmem:[%s533 + $0xe8] sm:$0xff]
    %v564 = vld [vmem:[%s533 + $0xf0] sm:$0xff]
    %v565 = vld [vmem:[%s533 + $0xf8] sm:$0xff]
    %v566 = vld [vmem:[%s533 + $0x100] sm:$0xff]
    %v567 = vld [vmem:[%s533 + $0x108] sm:$0xff]
    %v568 = vld [vmem:[%s533 + $0x110] sm:$0xff]
    %v569 = vld [vmem:[%s533 + $0x118] sm:$0xff]
    %v570 = vld [vmem:[%s533 + $0x120] sm:$0xff]
    %v571 = vld [vmem:[%s533 + $0x128] sm:$0xff]
    %v572 = vld [vmem:[%s533 + $0x130] sm:$0xff]
    %v573 = vld [vmem:[%s533 + $0x138] sm:$0xff]
    %v574 = vld [vmem:[%s533 + $0x140] sm:$0xff]
    %v575 = vld [vmem:[%s533 + $0x148] sm:$0xff]
    %v576 = vld [vmem:[%s533 + $0x150] sm:$0xff]
    %v577 = vld [vmem:[%s533 + $0x158] sm:$0xff]
    %v578 = vld [vmem:[%s533 + $0x160] sm:$0xff]
    %v579 = vld [vmem:[%s533 + $0x168] sm:$0xff]
    %v580 = vld [vmem:[%s533 + $0x170] sm:$0xff]
    %v581 = vld [vmem:[%s533 + $0x178] sm:$0xff]
    %v582 = vld [vmem:[%s533 + $0x180] sm:$0xff]
    %v583 = vld [vmem:[%s533 + $0x188] sm:$0xff]
    %v584 = vld [vmem:[%s533 + $0x190] sm:$0xff]
    %v585 = vld [vmem:[%s533 + $0x198] sm:$0xff]
    %v586 = vld [vmem:[%s533 + $0x1a0] sm:$0xff]
    %v587 = vld [vmem:[%s533 + $0x1a8] sm:$0xff]
    %v588 = vld [vmem:[%s533 + $0x1b0] sm:$0xff]
    %v589 = vld [vmem:[%s533 + $0x1b8] sm:$0xff]
    %v590 = vld [vmem:[%s533 + $0x1c0] sm:$0xff]
    %v591 = vld [vmem:[%s533 + $0x1c8] sm:$0xff]
    %v592 = vld [vmem:[%s533 + $0x1d0] sm:$0xff]
    %v593 = vld [vmem:[%s533 + $0x1d8] sm:$0xff]
    %v594 = vld [vmem:[%s533 + $0x1e0] sm:$0xff]
    %v595 = vld [vmem:[%s533 + $0x1e8] sm:$0xff]
    %v596 = vld [vmem:[%s533 + $0x1f0] sm:$0xff]
    %v597 = vld [vmem:[%s533 + $0x1f8] sm:$0xff]
    %598 = vmatpush.msra.mxu0 %v549
    %599 = vmatpush.msra.mxu0 %v548
    %600 = vmatpush.msra.mxu0 %v547
    %601 = vmatpush.msra.mxu0 %v546
    %602 = vmatpush.msra.mxu0 %v545
    %603 = vmatpush.msra.mxu0 %v544
    %604 = vmatpush.msra.mxu0 %v543
    %605 = vmatpush.msra.mxu0 %v542
    %606 = vmatpush.msra.mxu0 %v541
    %607 = vmatpush.msra.mxu0 %v540
    %608 = vmatpush.msra.mxu0 %v539
    %609 = vmatpush.msra.mxu0 %v538
    %610 = vmatpush.msra.mxu0 %v537
    %611 = vmatpush.msra.mxu0 %v536
    %612 = vmatpush.msra.mxu0 %v535
    %613 = vmatpush.msra.mxu0 %v534
    %614 = vmatmul.f32.gmra.mxu0 %v529
    %v615 = vpop.f32.mrf.mxu0
    %v616 = vadd.f32 0.0, %v615
    %617 = vdwg.mxu0
    %618 = vmatpush.msra.mxu0 %v565
    %619 = vmatpush.msra.mxu0 %v564
    %620 = vmatpush.msra.mxu0 %v563
    %621 = vmatpush.msra.mxu0 %v562
    %622 = vmatpush.msra.mxu0 %v561
    %623 = vmatpush.msra.mxu0 %v560
    %624 = vmatpush.msra.mxu0 %v559
    %625 = vmatpush.msra.mxu0 %v558
    %626 = vmatpush.msra.mxu0 %v557
    %627 = vmatpush.msra.mxu0 %v556
    %628 = vmatpush.msra.mxu0 %v555
    %629 = vmatpush.msra.mxu0 %v554
    %630 = vmatpush.msra.mxu0 %v553
    %631 = vmatpush.msra.mxu0 %v552
    %632 = vmatpush.msra.mxu0 %v551
    %633 = vmatpush.msra.mxu0 %v550
    %634 = vmatmul.f32.gmra.mxu0 %v530
    %v635 = vpop.f32.mrf.mxu0
    %v636 = vadd.f32 %v616, %v635
    %637 = vdwg.mxu0
    %638 = vmatpush.msra.mxu0 %v581
    %639 = vmatpush.msra.mxu0 %v580
    %640 = vmatpush.msra.mxu0 %v579
    %641 = vmatpush.msra.mxu0 %v578
    %642 = vmatpush.msra.mxu0 %v577
    %643 = vmatpush.msra.mxu0 %v576
    %644 = vmatpush.msra.mxu0 %v575
    %645 = vmatpush.msra.mxu0 %v574
    %646 = vmatpush.msra.mxu0 %v573
    %647 = vmatpush.msra.mxu0 %v572
    %648 = vmatpush.msra.mxu0 %v571
    %649 = vmatpush.msra.mxu0 %v570
    %650 = vmatpush.msra.mxu0 %v569
    %651 = vmatpush.msra.mxu0 %v568
    %652 = vmatpush.msra.mxu0 %v567
    %653 = vmatpush.msra.mxu0 %v566
    %654 = vmatmul.f32.gmra.mxu0 %v531
    %v655 = vpop.f32.mrf.mxu0
    %v656 = vadd.f32 %v636, %v655
    %657 = vdwg.mxu0
    %658 = vmatpush.msra.mxu0 %v597
    %659 = vmatpush.msra.mxu0 %v596
    %660 = vmatpush.msra.mxu0 %v595
    %661 = vmatpush.msra.mxu0 %v594
    %662 = vmatpush.msra.mxu0 %v593
    %663 = vmatpush.msra.mxu0 %v592
    %664 = vmatpush.msra.mxu0 %v591
    %665 = vmatpush.msra.mxu0 %v590
    %666 = vmatpush.msra.mxu0 %v589
    %667 = vmatpush.msra.mxu0 %v588
    %668 = vmatpush.msra.mxu0 %v587
    %669 = vmatpush.msra.mxu0 %v586
    %670 = vmatpush.msra.mxu0 %v585
    %671 = vmatpush.msra.mxu0 %v584
    %672 = vmatpush.msra.mxu0 %v583
    %673 = vmatpush.msra.mxu0 %v582
    %674 = vmatmul.f32.gmra.mxu0 %v532
    %v675 = vpop.f32.mrf.mxu0
    %v676 = vadd.f32 %v656, %v675
    %677 = vdwg.mxu0
    %v678 = vadd.f32 %v517, %v676
    %679 = vst [vmem:[#allocation5] sm:$0xff] %v678
    // Predicated region
    $region14: #{tpu_custom_call.1} parent=1 // pred_check
      _
    $region15: #{tpu_custom_call.1} parent=1 // pred_check_branch
      %681 = sbr.rel (0) target = $region17
    $region16: #{tpu_custom_call.1} parent=1 // pred_region
      %683 = vsyncadd [#allocation4], 0
      %s685 = sshll.u32 [#allocation5], 4
      %s686 = int_to_ptr.vmem [resolvable:$true] %s685
      %s687 = sshll.u32 %s2, 4
      %s688 = int_to_ptr.hbm [resolvable:$true] %s687
      %690 = dma.vmem_to_hbm [thread:$0]  %s686, 128, %s688, [#allocation4]
    $region17: #{tpu_custom_call.1} parent=1 // pred_fallthru
      _
    // Predicated region
    $region18: #{tpu_custom_call.1} parent=1 // pred_check
      _
    $region19: #{tpu_custom_call.1} parent=1 // pred_check_branch
      %692 = sbr.rel (0) target = $region21
    $region20: #{tpu_custom_call.1} parent=1 // pred_region
      %694 = dma.done [#allocation4], 128
    $region21: #{tpu_custom_call.1} parent=1 // pred_fallthru
      _
    %695 = vsyncpa [#allocation3], 1
    %696 = vsyncpa [#allocation4], 1

</llo_original>
